<compile_context>
chip_gen: v7x
topology: tpu7x:2x2x1
jax: 0.10.0
libtpu: 0.0.40
codegen_flags: <defaults>
</compile_context>

<pallas_src>
import functools

import jax
import jax.numpy as jnp
from jax.experimental import pallas as pl
from jax.experimental.pallas import tpu as pltpu


def _simple_kernel(x_ref, y_ref, w1_ref, b1_ref, w2_ref, b2_ref, out_ref,
                   *, Bx, By):
    # x_ref : (Bx, S, D)   y_ref : (By, S, D)
    # w1_ref: (D, H)  b1_ref: (1, H)  w2_ref: (H, O)  b2_ref: (1, O)
    # out   : (S, O)

    # Compose the two linear layers on the MXU (tiny: (D,H)@(H,O)).
    wc = jnp.dot(w1_ref[...], w2_ref[...],
                 preferred_element_type=jnp.float32)               # (D, O)
    bc = jnp.dot(b1_ref[...], w2_ref[...],
                 preferred_element_type=jnp.float32) + b2_ref[...]  # (1, O)

    def batch_max(ref, n_batch):
        # Unrolled incremental max-fold over the leading (batch) axis.
        # Keeps only the running max + current block live (no big prod spill).
        m = jnp.dot(ref[0], wc, preferred_element_type=jnp.float32)  # (S, O)
        for b in range(1, n_batch):
            m = jnp.maximum(
                m, jnp.dot(ref[b], wc, preferred_element_type=jnp.float32))
        return m

    mx = batch_max(x_ref, Bx)      # max over x's batch dim (bias-free)
    my = batch_max(y_ref, By)      # max over y's batch dim (bias-free)

    # Bias is constant over the batch dim, so it commutes with the max:
    # max_b(v@wc + bc) = max_b(v@wc) + bc  ->  add 2*bc once at the end.
    out_ref[...] = mx + my + 2.0 * bc


@jax.jit
def simple_forward(x, y, w1, b1, w2, b2):
    Bx, S, _ = x.shape
    By = y.shape[0]
    O = w2.shape[1]
    assert Bx >= 1 and By >= 1, "empty batch dim not supported"

    vmem = pl.BlockSpec(memory_space=pltpu.MemorySpace.VMEM)
    kernel = functools.partial(_simple_kernel, Bx=Bx, By=By)
    return pl.pallas_call(
        kernel,
        out_shape=jax.ShapeDtypeStruct((S, O), jnp.float32),
        in_specs=[vmem] * 6,
        out_specs=vmem,
    )(x, y, w1, b1, w2, b2)


if __name__ == "__main__":
    input_dim, hid_dim, out_dim = 10, 32, 16
    Bx, By, S = 4, 5, 50

    key = jax.random.PRNGKey(0)
    kx, ky, kw1, kb1, kw2, kb2 = jax.random.split(key, 6)

    x = jax.random.normal(kx, (Bx, S, input_dim), dtype=jnp.float32)
    y = jax.random.normal(ky, (By, S, input_dim), dtype=jnp.float32)

    # Parameters (PyTorch Linear stores (out, in); we keep them (in, out)).
    w1 = jax.random.normal(kw1, (input_dim, hid_dim), dtype=jnp.float32) * 0.1
    b1 = jax.random.normal(kb1, (1, hid_dim), dtype=jnp.float32) * 0.1
    w2 = jax.random.normal(kw2, (hid_dim, out_dim), dtype=jnp.float32) * 0.1
    b2 = jax.random.normal(kb2, (1, out_dim), dtype=jnp.float32) * 0.1

    out = simple_forward(x, y, w1, b1, w2, b2)
    out = jax.block_until_ready(out)

    # Pure-JAX reference of the original (unfused) forward pass.
    def ref(v):
        i = jnp.einsum("bsd,dh->bsh", v, w1) + b1
        o = jnp.einsum("bsh,ho->bso", i, w2) + b2
        return jnp.max(o, axis=0)

    expected = ref(x) + ref(y)
    assert out.shape == (S, out_dim)
    assert jnp.allclose(out, expected, atol=1e-4, rtol=1e-4)

    print("KERNEL_OK")
</pallas_src>

<mosaic_0001>
module attributes {stable_mosaic.version = 11 : i64} {
  func.func @_simple_kernel(%arg0: memref<4x50x10xf32, #tpu.memory_space<vmem>>, %arg1: memref<5x50x10xf32, #tpu.memory_space<vmem>>, %arg2: memref<10x32xf32, #tpu.memory_space<vmem>>, %arg3: memref<1x32xf32, #tpu.memory_space<vmem>>, %arg4: memref<32x16xf32, #tpu.memory_space<vmem>>, %arg5: memref<1x16xf32, #tpu.memory_space<vmem>>, %arg6: memref<50x16xf32, #tpu.memory_space<vmem>>) attributes {dimension_semantics = [], scalar_prefetch = 0 : i64, scratch_operands = 0 : i64, tpu.core_type = #tpu.core_type<tc>} {
    %c0 = arith.constant 0 : index
    %c0_0 = arith.constant 0 : index
    %0 = vector.load %arg2[%c0, %c0_0] : memref<10x32xf32, #tpu.memory_space<vmem>>, vector<10x32xf32>
    %c0_1 = arith.constant 0 : index
    %c0_2 = arith.constant 0 : index
    %1 = vector.load %arg4[%c0_1, %c0_2] : memref<32x16xf32, #tpu.memory_space<vmem>>, vector<32x16xf32>
    %cst = arith.constant dense<0.000000e+00> : vector<10x16xf32>
    %2 = tpu.matmul %0, %1, %cst {dimension_numbers = #tpu.dot_dimension_numbers<[1], [0], [0], [1], [0, 0, 1, 1], [], []>} : vector<10x32xf32>, vector<32x16xf32>, vector<10x16xf32> -> vector<10x16xf32>
    %c0_3 = arith.constant 0 : index
    %c0_4 = arith.constant 0 : index
    %3 = vector.load %arg3[%c0_3, %c0_4] : memref<1x32xf32, #tpu.memory_space<vmem>>, vector<1x32xf32>
    %c0_5 = arith.constant 0 : index
    %c0_6 = arith.constant 0 : index
    %4 = vector.load %arg4[%c0_5, %c0_6] : memref<32x16xf32, #tpu.memory_space<vmem>>, vector<32x16xf32>
    %cst_7 = arith.constant dense<0.000000e+00> : vector<1x16xf32>
    %5 = tpu.matmul %3, %4, %cst_7 {dimension_numbers = #tpu.dot_dimension_numbers<[1], [0], [0], [1], [0, 0, 1, 1], [], []>} : vector<1x32xf32>, vector<32x16xf32>, vector<1x16xf32> -> vector<1x16xf32>
    %c0_8 = arith.constant 0 : index
    %c0_9 = arith.constant 0 : index
    %6 = vector.load %arg5[%c0_8, %c0_9] : memref<1x16xf32, #tpu.memory_space<vmem>>, vector<1x16xf32>
    %7 = arith.addf %5, %6 : vector<1x16xf32>
    %c0_10 = arith.constant 0 : index
    %c0_11 = arith.constant 0 : index
    %c0_12 = arith.constant 0 : index
    %8 = vector.load %arg0[%c0_10, %c0_11, %c0_12] : memref<4x50x10xf32, #tpu.memory_space<vmem>>, vector<1x50x10xf32>
    %9 = vector.shape_cast %8 : vector<1x50x10xf32> to vector<50x10xf32>
    %cst_13 = arith.constant dense<0.000000e+00> : vector<50x16xf32>
    %10 = tpu.matmul %9, %2, %cst_13 {dimension_numbers = #tpu.dot_dimension_numbers<[1], [0], [0], [1], [0, 0, 1, 1], [], []>} : vector<50x10xf32>, vector<10x16xf32>, vector<50x16xf32> -> vector<50x16xf32>
    %c1 = arith.constant 1 : index
    %c0_14 = arith.constant 0 : index
    %c0_15 = arith.constant 0 : index
    %11 = vector.load %arg0[%c1, %c0_14, %c0_15] : memref<4x50x10xf32, #tpu.memory_space<vmem>>, vector<1x50x10xf32>
    %12 = vector.shape_cast %11 : vector<1x50x10xf32> to vector<50x10xf32>
    %cst_16 = arith.constant dense<0.000000e+00> : vector<50x16xf32>
    %13 = tpu.matmul %12, %2, %cst_16 {dimension_numbers = #tpu.dot_dimension_numbers<[1], [0], [0], [1], [0, 0, 1, 1], [], []>} : vector<50x10xf32>, vector<10x16xf32>, vector<50x16xf32> -> vector<50x16xf32>
    %14 = arith.maximumf %10, %13 : vector<50x16xf32>
    %c2 = arith.constant 2 : index
    %c0_17 = arith.constant 0 : index
    %c0_18 = arith.constant 0 : index
    %15 = vector.load %arg0[%c2, %c0_17, %c0_18] : memref<4x50x10xf32, #tpu.memory_space<vmem>>, vector<1x50x10xf32>
    %16 = vector.shape_cast %15 : vector<1x50x10xf32> to vector<50x10xf32>
    %cst_19 = arith.constant dense<0.000000e+00> : vector<50x16xf32>
    %17 = tpu.matmul %16, %2, %cst_19 {dimension_numbers = #tpu.dot_dimension_numbers<[1], [0], [0], [1], [0, 0, 1, 1], [], []>} : vector<50x10xf32>, vector<10x16xf32>, vector<50x16xf32> -> vector<50x16xf32>
    %18 = arith.maximumf %14, %17 : vector<50x16xf32>
    %c3 = arith.constant 3 : index
    %c0_20 = arith.constant 0 : index
    %c0_21 = arith.constant 0 : index
    %19 = vector.load %arg0[%c3, %c0_20, %c0_21] : memref<4x50x10xf32, #tpu.memory_space<vmem>>, vector<1x50x10xf32>
    %20 = vector.shape_cast %19 : vector<1x50x10xf32> to vector<50x10xf32>
    %cst_22 = arith.constant dense<0.000000e+00> : vector<50x16xf32>
    %21 = tpu.matmul %20, %2, %cst_22 {dimension_numbers = #tpu.dot_dimension_numbers<[1], [0], [0], [1], [0, 0, 1, 1], [], []>} : vector<50x10xf32>, vector<10x16xf32>, vector<50x16xf32> -> vector<50x16xf32>
    %22 = arith.maximumf %18, %21 : vector<50x16xf32>
    %c0_23 = arith.constant 0 : index
    %c0_24 = arith.constant 0 : index
    %c0_25 = arith.constant 0 : index
    %23 = vector.load %arg1[%c0_23, %c0_24, %c0_25] : memref<5x50x10xf32, #tpu.memory_space<vmem>>, vector<1x50x10xf32>
    %24 = vector.shape_cast %23 : vector<1x50x10xf32> to vector<50x10xf32>
    %cst_26 = arith.constant dense<0.000000e+00> : vector<50x16xf32>
    %25 = tpu.matmul %24, %2, %cst_26 {dimension_numbers = #tpu.dot_dimension_numbers<[1], [0], [0], [1], [0, 0, 1, 1], [], []>} : vector<50x10xf32>, vector<10x16xf32>, vector<50x16xf32> -> vector<50x16xf32>
    %c1_27 = arith.constant 1 : index
    %c0_28 = arith.constant 0 : index
    %c0_29 = arith.constant 0 : index
    %26 = vector.load %arg1[%c1_27, %c0_28, %c0_29] : memref<5x50x10xf32, #tpu.memory_space<vmem>>, vector<1x50x10xf32>
    %27 = vector.shape_cast %26 : vector<1x50x10xf32> to vector<50x10xf32>
    %cst_30 = arith.constant dense<0.000000e+00> : vector<50x16xf32>
    %28 = tpu.matmul %27, %2, %cst_30 {dimension_numbers = #tpu.dot_dimension_numbers<[1], [0], [0], [1], [0, 0, 1, 1], [], []>} : vector<50x10xf32>, vector<10x16xf32>, vector<50x16xf32> -> vector<50x16xf32>
    %29 = arith.maximumf %25, %28 : vector<50x16xf32>
    %c2_31 = arith.constant 2 : index
    %c0_32 = arith.constant 0 : index
    %c0_33 = arith.constant 0 : index
    %30 = vector.load %arg1[%c2_31, %c0_32, %c0_33] : memref<5x50x10xf32, #tpu.memory_space<vmem>>, vector<1x50x10xf32>
    %31 = vector.shape_cast %30 : vector<1x50x10xf32> to vector<50x10xf32>
    %cst_34 = arith.constant dense<0.000000e+00> : vector<50x16xf32>
    %32 = tpu.matmul %31, %2, %cst_34 {dimension_numbers = #tpu.dot_dimension_numbers<[1], [0], [0], [1], [0, 0, 1, 1], [], []>} : vector<50x10xf32>, vector<10x16xf32>, vector<50x16xf32> -> vector<50x16xf32>
    %33 = arith.maximumf %29, %32 : vector<50x16xf32>
    %c3_35 = arith.constant 3 : index
    %c0_36 = arith.constant 0 : index
    %c0_37 = arith.constant 0 : index
    %34 = vector.load %arg1[%c3_35, %c0_36, %c0_37] : memref<5x50x10xf32, #tpu.memory_space<vmem>>, vector<1x50x10xf32>
    %35 = vector.shape_cast %34 : vector<1x50x10xf32> to vector<50x10xf32>
    %cst_38 = arith.constant dense<0.000000e+00> : vector<50x16xf32>
    %36 = tpu.matmul %35, %2, %cst_38 {dimension_numbers = #tpu.dot_dimension_numbers<[1], [0], [0], [1], [0, 0, 1, 1], [], []>} : vector<50x10xf32>, vector<10x16xf32>, vector<50x16xf32> -> vector<50x16xf32>
    %37 = arith.maximumf %33, %36 : vector<50x16xf32>
    %c4 = arith.constant 4 : index
    %c0_39 = arith.constant 0 : index
    %c0_40 = arith.constant 0 : index
    %38 = vector.load %arg1[%c4, %c0_39, %c0_40] : memref<5x50x10xf32, #tpu.memory_space<vmem>>, vector<1x50x10xf32>
    %39 = vector.shape_cast %38 : vector<1x50x10xf32> to vector<50x10xf32>
    %cst_41 = arith.constant dense<0.000000e+00> : vector<50x16xf32>
    %40 = tpu.matmul %39, %2, %cst_41 {dimension_numbers = #tpu.dot_dimension_numbers<[1], [0], [0], [1], [0, 0, 1, 1], [], []>} : vector<50x10xf32>, vector<10x16xf32>, vector<50x16xf32> -> vector<50x16xf32>
    %41 = arith.maximumf %37, %40 : vector<50x16xf32>
    %42 = arith.addf %22, %41 : vector<50x16xf32>
    %cst_42 = arith.constant 2.000000e+00 : f32
    %43 = vector.broadcast %cst_42 : f32 to vector<1x16xf32>
    %44 = arith.mulf %43, %7 : vector<1x16xf32>
    %45 = vector.broadcast %44 : vector<1x16xf32> to vector<50x16xf32>
    %46 = arith.addf %42, %45 : vector<50x16xf32>
    %c0_43 = arith.constant 0 : index
    %c0_44 = arith.constant 0 : index
    %47 = vector.load %arg6[%c0_43, %c0_44] : memref<50x16xf32, #tpu.memory_space<vmem>>, vector<50x16xf32>
    tpu.vector_store %arg6[%c0_43, %c0_44], %46 {strides = array<i32>} : memref<50x16xf32, #tpu.memory_space<vmem>>, vector<50x16xf32>,
    return
  }
}

</mosaic_0001>

<llo_original>
// kernel: simple_forward.1
$region0: #{simple_forward.1}
  #allocation0 [shape = 'u32[]', space=smem, size = 0x4, offset = 0x4, fixed_abs, tag = 'smem constant byte address 0x4 - core index']
  #allocation1 [shape = 'u32[144,128]{1,0:T(1,128)}', space=vmem, size = 0x12000, scoped, tag = 'internal scratch']
  %s0 = inlined_call_operand.vmem [shape: f32[4,50,10], index: 0, kind: input, shape index: {}]
  %s1 = inlined_call_operand.vmem [shape: f32[5,50,10], index: 1, kind: input, shape index: {}]
  %s2 = inlined_call_operand.vmem [shape: f32[10,32], index: 2, kind: input, shape index: {}]
  %s3 = inlined_call_operand.vmem [shape: f32[1,32], index: 3, kind: input, shape index: {}]
  %s4 = inlined_call_operand.vmem [shape: f32[32,16], index: 4, kind: input, shape index: {}]
  %s5 = inlined_call_operand.vmem [shape: f32[1,16], index: 5, kind: input, shape index: {}]
  %s6 = inlined_call_operand.vmem [shape: f32[50,16], index: 6, kind: output, shape index: {}]
  %s7 = sld [smem:[#allocation0]]
  $region34: #{simple_forward.1} parent=0
    _
  %s9 = ssub.s32 1, %s7
  %s10 = scalar_select 0, %s9, %s7
  // Predicated region
  $region2: #{simple_forward.1} parent=0 // pred_check
    _
  $region3: #{simple_forward.1} parent=0 // pred_check_branch
    %12 = sbr.rel (0) target = $region5
  $region4: #{simple_forward.1} parent=0 // pred_region
    _
  $region5: #{simple_forward.1} parent=0 // pred_fallthru
    _
  // Predicated region
  $region6: #{simple_forward.1} parent=0 // pred_check
    _
  $region7: #{simple_forward.1} parent=0 // pred_check_branch
    %14 = sbr.rel (0) target = $region9
  $region8: #{simple_forward.1} parent=0 // pred_region
    _
  $region9: #{simple_forward.1} parent=0 // pred_fallthru
    _
  // Predicated region
  $region10: #{simple_forward.1} parent=0 // pred_check
    _
  $region11: #{simple_forward.1} parent=0 // pred_check_branch
    %16 = sbr.rel (0) target = $region13
  $region12: #{simple_forward.1} parent=0 // pred_region
    _
  $region13: #{simple_forward.1} parent=0 // pred_fallthru
    _
  // Predicated region
  $region14: #{simple_forward.1} parent=0 // pred_check
    _
  $region15: #{simple_forward.1} parent=0 // pred_check_branch
    %18 = sbr.rel (0) target = $region17
  $region16: #{simple_forward.1} parent=0 // pred_region
    _
  $region17: #{simple_forward.1} parent=0 // pred_fallthru
    _
  // Predicated region
  $region18: #{simple_forward.1} parent=0 // pred_check
    _
  $region19: #{simple_forward.1} parent=0 // pred_check_branch
    %20 = sbr.rel (0) target = $region21
  $region20: #{simple_forward.1} parent=0 // pred_region
    _
  $region21: #{simple_forward.1} parent=0 // pred_fallthru
    _
  // Predicated region
  $region22: #{simple_forward.1} parent=0 // pred_check
    _
  $region23: #{simple_forward.1} parent=0 // pred_check_branch
    %22 = sbr.rel (0) target = $region25
  $region24: #{simple_forward.1} parent=0 // pred_region
    _
  $region25: #{simple_forward.1} parent=0 // pred_fallthru
    _
  %v23 = vld [vmem:[%s2] sm:$0xff]
  %v24 = vld [vmem:[%s2 + $0x8] sm:$0x3]
  %v25 = vld [vmem:[%s4] sm:$0xff]
  %v26 = vld [vmem:[%s4 + $0x8] sm:$0xff]
  %v27 = vld [vmem:[%s4 + $0x10] sm:$0xff]
  %v28 = vld [vmem:[%s4 + $0x18] sm:$0xff]
  %vm29 = vcmask 261120
  %v31 = vsel %vm29, %v23, 0
  %v34 = vsel %vm29, %v24, 0
  %36 = vmatprep.subr.mxu0 0.0
  %37 = vmatpush1.msra.mxu0 %v25
  %38 = vmatprep.subr.mxu0 0.0
  %39 = vmatpush1.msra.mxu0 %v26
  %40 = vmatprep.subr.mxu0 0.0
  %41 = vmatpush1.msra.mxu0 %v27
  %42 = vmatprep.subr.mxu0 0.0
  %43 = vmatpush1.msra.mxu0 %v28
  %44 = vmatprep.subr.mxu0 0.0
  %45 = vmatpush1.msra.mxu0 0.0
  %46 = vmatprep.subr.mxu0 0.0
  %47 = vmatpush1.msra.mxu0 0.0
  %48 = vmatprep.subr.mxu0 0.0
  %49 = vmatpush1.msra.mxu0 0.0
  %50 = vmatprep.subr.mxu0 0.0
  %51 = vmatpush1.msra.mxu0 0.0
  %52 = vmatprep.subr.mxu0 0.0
  %53 = vmatpush1.msra.mxu0 0.0
  %54 = vmatprep.subr.mxu0 0.0
  %55 = vmatpush1.msra.mxu0 0.0
  %56 = vmatprep.subr.mxu0 0.0
  %57 = vmatpush1.msra.mxu0 0.0
  %58 = vmatprep.subr.mxu0 0.0
  %59 = vmatpush1.msra.mxu0 0.0
  %60 = vmatprep.subr.mxu0 0.0
  %61 = vmatpush1.msra.mxu0 0.0
  %62 = vmatprep.subr.mxu0 0.0
  %63 = vmatpush1.msra.mxu0 0.0
  %64 = vmatprep.subr.mxu0 0.0
  %65 = vmatpush1.msra.mxu0 0.0
  %66 = vmatprep.subr.mxu0 0.0
  %67 = vmatpush1.msra.mxu0 0.0
  %68 = vmatprep.subr.mxu0 0.0
  %69 = vmatpush1.msra.mxu0 0.0
  %70 = vmatprep.subr.mxu0 0.0
  %71 = vmatpush1.msra.mxu0 0.0
  %72 = vmatprep.subr.mxu0 0.0
  %73 = vmatpush1.msra.mxu0 0.0
  %74 = vmatprep.subr.mxu0 0.0
  %75 = vmatpush1.msra.mxu0 0.0
  %76 = vmatprep.subr.mxu0 0.0
  %77 = vmatpush1.msra.mxu0 0.0
  %78 = vmatprep.subr.mxu0 0.0
  %79 = vmatpush1.msra.mxu0 0.0
  %80 = vmatprep.subr.mxu0 0.0
  %81 = vmatpush1.msra.mxu0 0.0
  %82 = vmatprep.subr.mxu0 0.0
  %83 = vmatpush1.msra.mxu0 0.0
  %84 = vmatprep.subr.mxu0 0.0
  %85 = vmatpush1.msra.mxu0 0.0
  %86 = vmatprep.subr.mxu0 0.0
  %87 = vmatpush1.msra.mxu0 0.0
  %88 = vmatprep.subr.mxu0 0.0
  %89 = vmatpush1.msra.mxu0 0.0
  %90 = vmatprep.subr.mxu0 0.0
  %91 = vmatpush1.msra.mxu0 0.0
  %92 = vmatprep.subr.mxu0 0.0
  %93 = vmatpush1.msra.mxu0 0.0
  %94 = vmatprep.subr.mxu0 0.0
  %95 = vmatpush1.msra.mxu0 0.0
  %96 = vmatprep.subr.mxu0 0.0
  %97 = vmatpush1.msra.mxu0 0.0
  %98 = vmatprep.subr.mxu0 0.0
  %99 = vmatpush1.msra.mxu0 0.0
  %100 = vmatprep.mubr.f32.mxu0 0.0
  %101 = vmatmul.mubr.f32.gmra.mrb[0].mxu0 %v31
  %v102 = vpop.f32.mrb[0].mxu0
  %v103 = vadd.f32 0.0, %v102
  %v104 = vpop.f32.mrb[0].mxu0
  %105 = vmatprep.mubr.f32.mxu0 0.0
  %106 = vmatmul.mubr.f32.gmra.mrb[0].mxu0 %v34
  %v107 = vpop.f32.mrb[0].mxu0
  %v108 = vadd.f32 0.0, %v107
  %v109 = vpop.f32.mrb[0].mxu0
  %110 = vdwg.mxu0
  %v111 = vld [vmem:[%s3] sm:$0x1]
  %v112 = vld [vmem:[%s5] sm:$0x1]
  %v114 = vsel %vm29, %v111, 0
  %116 = vmatprep.subr.mxu0 0.0
  %117 = vmatpush1.msra.mxu0 %v25
  %118 = vmatprep.subr.mxu0 0.0
  %119 = vmatpush1.msra.mxu0 %v26
  %120 = vmatprep.subr.mxu0 0.0
  %121 = vmatpush1.msra.mxu0 %v27
  %122 = vmatprep.subr.mxu0 0.0
  %123 = vmatpush1.msra.mxu0 %v28
  %124 = vmatprep.subr.mxu0 0.0
  %125 = vmatpush1.msra.mxu0 0.0
  %126 = vmatprep.subr.mxu0 0.0
  %127 = vmatpush1.msra.mxu0 0.0
  %128 = vmatprep.subr.mxu0 0.0
  %129 = vmatpush1.msra.mxu0 0.0
  %130 = vmatprep.subr.mxu0 0.0
  %131 = vmatpush1.msra.mxu0 0.0
  %132 = vmatprep.subr.mxu0 0.0
  %133 = vmatpush1.msra.mxu0 0.0
  %134 = vmatprep.subr.mxu0 0.0
  %135 = vmatpush1.msra.mxu0 0.0
  %136 = vmatprep.subr.mxu0 0.0
  %137 = vmatpush1.msra.mxu0 0.0
  %138 = vmatprep.subr.mxu0 0.0
  %139 = vmatpush1.msra.mxu0 0.0
  %140 = vmatprep.subr.mxu0 0.0
  %141 = vmatpush1.msra.mxu0 0.0
  %142 = vmatprep.subr.mxu0 0.0
  %143 = vmatpush1.msra.mxu0 0.0
  %144 = vmatprep.subr.mxu0 0.0
  %145 = vmatpush1.msra.mxu0 0.0
  %146 = vmatprep.subr.mxu0 0.0
  %147 = vmatpush1.msra.mxu0 0.0
  %148 = vmatprep.subr.mxu0 0.0
  %149 = vmatpush1.msra.mxu0 0.0
  %150 = vmatprep.subr.mxu0 0.0
  %151 = vmatpush1.msra.mxu0 0.0
  %152 = vmatprep.subr.mxu0 0.0
  %153 = vmatpush1.msra.mxu0 0.0
  %154 = vmatprep.subr.mxu0 0.0
  %155 = vmatpush1.msra.mxu0 0.0
  %156 = vmatprep.subr.mxu0 0.0
  %157 = vmatpush1.msra.mxu0 0.0
  %158 = vmatprep.subr.mxu0 0.0
  %159 = vmatpush1.msra.mxu0 0.0
  %160 = vmatprep.subr.mxu0 0.0
  %161 = vmatpush1.msra.mxu0 0.0
  %162 = vmatprep.subr.mxu0 0.0
  %163 = vmatpush1.msra.mxu0 0.0
  %164 = vmatprep.subr.mxu0 0.0
  %165 = vmatpush1.msra.mxu0 0.0
  %166 = vmatprep.subr.mxu0 0.0
  %167 = vmatpush1.msra.mxu0 0.0
  %168 = vmatprep.subr.mxu0 0.0
  %169 = vmatpush1.msra.mxu0 0.0
  %170 = vmatprep.subr.mxu0 0.0
  %171 = vmatpush1.msra.mxu0 0.0
  %172 = vmatprep.subr.mxu0 0.0
  %173 = vmatpush1.msra.mxu0 0.0
  %174 = vmatprep.subr.mxu0 0.0
  %175 = vmatpush1.msra.mxu0 0.0
  %176 = vmatprep.subr.mxu0 0.0
  %177 = vmatpush1.msra.mxu0 0.0
  %178 = vmatprep.subr.mxu0 0.0
  %179 = vmatpush1.msra.mxu0 0.0
  %180 = vmatprep.mubr.f32.mxu0 0.0
  %181 = vmatmul.mubr.f32.gmra.mrb[0].mxu0 %v114
  %v182 = vpop.f32.mrb[0].mxu0
  %v183 = vadd.f32 %v112, %v182
  %v184 = vpop.f32.mrb[0].mxu0
  %185 = vdwg.mxu0
  %v186 = vld [vmem:[%s0] sm:$0xff]
  %v187 = vld [vmem:[%s0 + $0x8] sm:$0xff]
  %v188 = vld [vmem:[%s0 + $0x10] sm:$0xff]
  %v189 = vld [vmem:[%s0 + $0x18] sm:$0xff]
  %v190 = vld [vmem:[%s0 + $0x20] sm:$0xff]
  %v191 = vld [vmem:[%s0 + $0x28] sm:$0xff]
  %v192 = vld [vmem:[%s0 + $0x30] sm:$0x3]
  %vm193 = vcmask 80896
  %v195 = vsel %vm193, %v186, 0
  %v198 = vsel %vm193, %v187, 0
  %v201 = vsel %vm193, %v188, 0
  %v204 = vsel %vm193, %v189, 0
  %v207 = vsel %vm193, %v190, 0
  %v210 = vsel %vm193, %v191, 0
  %v213 = vsel %vm193, %v192, 0
  %vm215 = vcmask 1041408
  %v217 = vsel %vm215, %v108, 0
  %219 = vmatprep.subr.mxu0 0.0
  %220 = vmatpush1.msra.mxu0 %v103
  %221 = vmatprep.subr.mxu0 0.0
  %222 = vmatpush1.msra.mxu0 %v217
  %223 = vmatprep.subr.mxu0 0.0
  %224 = vmatpush1.msra.mxu0 0.0
  %225 = vmatprep.subr.mxu0 0.0
  %226 = vmatpush1.msra.mxu0 0.0
  %227 = vmatprep.subr.mxu0 0.0
  %228 = vmatpush1.msra.mxu0 0.0
  %229 = vmatprep.subr.mxu0 0.0
  %230 = vmatpush1.msra.mxu0 0.0
  %231 = vmatprep.subr.mxu0 0.0
  %232 = vmatpush1.msra.mxu0 0.0
  %233 = vmatprep.subr.mxu0 0.0
  %234 = vmatpush1.msra.mxu0 0.0
  %235 = vmatprep.subr.mxu0 0.0
  %236 = vmatpush1.msra.mxu0 0.0
  %237 = vmatprep.subr.mxu0 0.0
  %238 = vmatpush1.msra.mxu0 0.0
  %239 = vmatprep.subr.mxu0 0.0
  %240 = vmatpush1.msra.mxu0 0.0
  %241 = vmatprep.subr.mxu0 0.0
  %242 = vmatpush1.msra.mxu0 0.0
  %243 = vmatprep.subr.mxu0 0.0
  %244 = vmatpush1.msra.mxu0 0.0
  %245 = vmatprep.subr.mxu0 0.0
  %246 = vmatpush1.msra.mxu0 0.0
  %247 = vmatprep.subr.mxu0 0.0
  %248 = vmatpush1.msra.mxu0 0.0
  %249 = vmatprep.subr.mxu0 0.0
  %250 = vmatpush1.msra.mxu0 0.0
  %251 = vmatprep.subr.mxu0 0.0
  %252 = vmatpush1.msra.mxu0 0.0
  %253 = vmatprep.subr.mxu0 0.0
  %254 = vmatpush1.msra.mxu0 0.0
  %255 = vmatprep.subr.mxu0 0.0
  %256 = vmatpush1.msra.mxu0 0.0
  %257 = vmatprep.subr.mxu0 0.0
  %258 = vmatpush1.msra.mxu0 0.0
  %259 = vmatprep.subr.mxu0 0.0
  %260 = vmatpush1.msra.mxu0 0.0
  %261 = vmatprep.subr.mxu0 0.0
  %262 = vmatpush1.msra.mxu0 0.0
  %263 = vmatprep.subr.mxu0 0.0
  %264 = vmatpush1.msra.mxu0 0.0
  %265 = vmatprep.subr.mxu0 0.0
  %266 = vmatpush1.msra.mxu0 0.0
  %267 = vmatprep.subr.mxu0 0.0
  %268 = vmatpush1.msra.mxu0 0.0
  %269 = vmatprep.subr.mxu0 0.0
  %270 = vmatpush1.msra.mxu0 0.0
  %271 = vmatprep.subr.mxu0 0.0
  %272 = vmatpush1.msra.mxu0 0.0
  %273 = vmatprep.subr.mxu0 0.0
  %274 = vmatpush1.msra.mxu0 0.0
  %275 = vmatprep.subr.mxu0 0.0
  %276 = vmatpush1.msra.mxu0 0.0
  %277 = vmatprep.subr.mxu0 0.0
  %278 = vmatpush1.msra.mxu0 0.0
  %279 = vmatprep.subr.mxu0 0.0
  %280 = vmatpush1.msra.mxu0 0.0
  %281 = vmatprep.subr.mxu0 0.0
  %282 = vmatpush1.msra.mxu0 0.0
  %283 = vmatprep.mubr.f32.mxu0 0.0
  %284 = vmatmul.mubr.f32.gmra.mrb[0].mxu0 %v195
  %v285 = vpop.f32.mrb[0].mxu0
  %v286 = vadd.f32 0.0, %v285
  %v287 = vpop.f32.mrb[0].mxu0
  %288 = vmatprep.mubr.f32.mxu0 0.0
  %289 = vmatmul.mubr.f32.gmra.mrb[0].mxu0 %v198
  %v290 = vpop.f32.mrb[0].mxu0
  %v291 = vadd.f32 0.0, %v290
  %v292 = vpop.f32.mrb[0].mxu0
  %293 = vmatprep.mubr.f32.mxu0 0.0
  %294 = vmatmul.mubr.f32.gmra.mrb[0].mxu0 %v201
  %v295 = vpop.f32.mrb[0].mxu0
  %v296 = vadd.f32 0.0, %v295
  %v297 = vpop.f32.mrb[0].mxu0
  %298 = vmatprep.mubr.f32.mxu0 0.0
  %299 = vmatmul.mubr.f32.gmra.mrb[0].mxu0 %v204
  %v300 = vpop.f32.mrb[0].mxu0
  %v301 = vadd.f32 0.0, %v300
  %v302 = vpop.f32.mrb[0].mxu0
  %303 = vmatprep.mubr.f32.mxu0 0.0
  %304 = vmatmul.mubr.f32.gmra.mrb[0].mxu0 %v207
  %v305 = vpop.f32.mrb[0].mxu0
  %v306 = vadd.f32 0.0, %v305
  %v307 = vpop.f32.mrb[0].mxu0
  %308 = vmatprep.mubr.f32.mxu0 0.0
  %309 = vmatmul.mubr.f32.gmra.mrb[0].mxu0 %v210
  %v310 = vpop.f32.mrb[0].mxu0
  %v311 = vadd.f32 0.0, %v310
  %v312 = vpop.f32.mrb[0].mxu0
  %313 = vmatprep.mubr.f32.mxu0 0.0
  %314 = vmatmul.mubr.f32.gmra.mrb[0].mxu0 %v213
  %v315 = vpop.f32.mrb[0].mxu0
  %v316 = vadd.f32 0.0, %v315
  %v317 = vpop.f32.mrb[0].mxu0
  %318 = vdwg.mxu0
  %s319 = scalar_lea.vmem %s0, 56
  %v320 = vld [vmem:[%s319] sm:$0xff]
  %v321 = vld [vmem:[%s319 + $0x8] sm:$0xff]
  %v322 = vld [vmem:[%s319 + $0x10] sm:$0xff]
  %v323 = vld [vmem:[%s319 + $0x18] sm:$0xff]
  %v324 = vld [vmem:[%s319 + $0x20] sm:$0xff]
  %v325 = vld [vmem:[%s319 + $0x28] sm:$0xff]
  %v326 = vld [vmem:[%s319 + $0x30] sm:$0x3]
  %v328 = vsel %vm193, %v320, 0
  %v331 = vsel %vm193, %v321, 0
  %v334 = vsel %vm193, %v322, 0
  %v337 = vsel %vm193, %v323, 0
  %v340 = vsel %vm193, %v324, 0
  %v343 = vsel %vm193, %v325, 0
  %v346 = vsel %vm193, %v326, 0
  %348 = vmatprep.subr.mxu0 0.0
  %349 = vmatpush1.msra.mxu0 %v103
  %350 = vmatprep.subr.mxu0 0.0
  %351 = vmatpush1.msra.mxu0 %v217
  %352 = vmatprep.subr.mxu0 0.0
  %353 = vmatpush1.msra.mxu0 0.0
  %354 = vmatprep.subr.mxu0 0.0
  %355 = vmatpush1.msra.mxu0 0.0
  %356 = vmatprep.subr.mxu0 0.0
  %357 = vmatpush1.msra.mxu0 0.0
  %358 = vmatprep.subr.mxu0 0.0
  %359 = vmatpush1.msra.mxu0 0.0
  %360 = vmatprep.subr.mxu0 0.0
  %361 = vmatpush1.msra.mxu0 0.0
  %362 = vmatprep.subr.mxu0 0.0
  %363 = vmatpush1.msra.mxu0 0.0
  %364 = vmatprep.subr.mxu0 0.0
  %365 = vmatpush1.msra.mxu0 0.0
  %366 = vmatprep.subr.mxu0 0.0
  %367 = vmatpush1.msra.mxu0 0.0
  %368 = vmatprep.subr.mxu0 0.0
  %369 = vmatpush1.msra.mxu0 0.0
  %370 = vmatprep.subr.mxu0 0.0
  %371 = vmatpush1.msra.mxu0 0.0
  %372 = vmatprep.subr.mxu0 0.0
  %373 = vmatpush1.msra.mxu0 0.0
  %374 = vmatprep.subr.mxu0 0.0
  %375 = vmatpush1.msra.mxu0 0.0
  %376 = vmatprep.subr.mxu0 0.0
  %377 = vmatpush1.msra.mxu0 0.0
  %378 = vmatprep.subr.mxu0 0.0
  %379 = vmatpush1.msra.mxu0 0.0
  %380 = vmatprep.subr.mxu0 0.0
  %381 = vmatpush1.msra.mxu0 0.0
  %382 = vmatprep.subr.mxu0 0.0
  %383 = vmatpush1.msra.mxu0 0.0
  %384 = vmatprep.subr.mxu0 0.0
  %385 = vmatpush1.msra.mxu0 0.0
  %386 = vmatprep.subr.mxu0 0.0
  %387 = vmatpush1.msra.mxu0 0.0
  %388 = vmatprep.subr.mxu0 0.0
  %389 = vmatpush1.msra.mxu0 0.0
  %390 = vmatprep.subr.mxu0 0.0
  %391 = vmatpush1.msra.mxu0 0.0
  %392 = vmatprep.subr.mxu0 0.0
  %393 = vmatpush1.msra.mxu0 0.0
  %394 = vmatprep.subr.mxu0 0.0
  %395 = vmatpush1.msra.mxu0 0.0
  %396 = vmatprep.subr.mxu0 0.0
  %397 = vmatpush1.msra.mxu0 0.0
  %398 = vmatprep.subr.mxu0 0.0
  %399 = vmatpush1.msra.mxu0 0.0
  %400 = vmatprep.subr.mxu0 0.0
  %401 = vmatpush1.msra.mxu0 0.0
  %402 = vmatprep.subr.mxu0 0.0
  %403 = vmatpush1.msra.mxu0 0.0
  %404 = vmatprep.subr.mxu0 0.0
  %405 = vmatpush1.msra.mxu0 0.0
  %406 = vmatprep.subr.mxu0 0.0
  %407 = vmatpush1.msra.mxu0 0.0
  %408 = vmatprep.subr.mxu0 0.0
  %409 = vmatpush1.msra.mxu0 0.0
  %410 = vmatprep.subr.mxu0 0.0
  %411 = vmatpush1.msra.mxu0 0.0
  %412 = vmatprep.mubr.f32.mxu0 0.0
  %413 = vmatmul.mubr.f32.gmra.mrb[0].mxu0 %v328
  %v414 = vpop.f32.mrb[0].mxu0
  %v415 = vadd.f32 0.0, %v414
  %v416 = vpop.f32.mrb[0].mxu0
  %417 = vmatprep.mubr.f32.mxu0 0.0
  %418 = vmatmul.mubr.f32.gmra.mrb[0].mxu0 %v331
  %v419 = vpop.f32.mrb[0].mxu0
  %v420 = vadd.f32 0.0, %v419
  %v421 = vpop.f32.mrb[0].mxu0
  %422 = vmatprep.mubr.f32.mxu0 0.0
  %423 = vmatmul.mubr.f32.gmra.mrb[0].mxu0 %v334
  %v424 = vpop.f32.mrb[0].mxu0
  %v425 = vadd.f32 0.0, %v424
  %v426 = vpop.f32.mrb[0].mxu0
  %427 = vmatprep.mubr.f32.mxu0 0.0
  %428 = vmatmul.mubr.f32.gmra.mrb[0].mxu0 %v337
  %v429 = vpop.f32.mrb[0].mxu0
  %v430 = vadd.f32 0.0, %v429
  %v431 = vpop.f32.mrb[0].mxu0
  %432 = vmatprep.mubr.f32.mxu0 0.0
  %433 = vmatmul.mubr.f32.gmra.mrb[0].mxu0 %v340
  %v434 = vpop.f32.mrb[0].mxu0
  %v435 = vadd.f32 0.0, %v434
  %v436 = vpop.f32.mrb[0].mxu0
  %437 = vmatprep.mubr.f32.mxu0 0.0
  %438 = vmatmul.mubr.f32.gmra.mrb[0].mxu0 %v343
  %v439 = vpop.f32.mrb[0].mxu0
  %v440 = vadd.f32 0.0, %v439
  %v441 = vpop.f32.mrb[0].mxu0
  %442 = vmatprep.mubr.f32.mxu0 0.0
  %443 = vmatmul.mubr.f32.gmra.mrb[0].mxu0 %v346
  %v444 = vpop.f32.mrb[0].mxu0
  %v445 = vadd.f32 0.0, %v444
  %v446 = vpop.f32.mrb[0].mxu0
  %447 = vdwg.mxu0
  %v448 = vmax.f32 %v286, %v415
  %v449 = vmax.f32 %v291, %v420
  %v450 = vmax.f32 %v296, %v425
  %v451 = vmax.f32 %v301, %v430
  %v452 = vmax.f32 %v306, %v435
  %v453 = vmax.f32 %v311, %v440
  %v454 = vmax.f32 %v316, %v445
  %s455 = scalar_lea.vmem %s0, 112
  %v456 = vld [vmem:[%s455] sm:$0xff]
  %v457 = vld [vmem:[%s455 + $0x8] sm:$0xff]
  %v458 = vld [vmem:[%s455 + $0x10] sm:$0xff]
  %v459 = vld [vmem:[%s455 + $0x18] sm:$0xff]
  %v460 = vld [vmem:[%s455 + $0x20] sm:$0xff]
  %v461 = vld [vmem:[%s455 + $0x28] sm:$0xff]
  %v462 = vld [vmem:[%s455 + $0x30] sm:$0x3]
  %v464 = vsel %vm193, %v456, 0
  %v467 = vsel %vm193, %v457, 0
  %v470 = vsel %vm193, %v458, 0
  %v473 = vsel %vm193, %v459, 0
  %v476 = vsel %vm193, %v460, 0
  %v479 = vsel %vm193, %v461, 0
  %v482 = vsel %vm193, %v462, 0
  %484 = vmatprep.subr.mxu0 0.0
  %485 = vmatpush1.msra.mxu0 %v103
  %486 = vmatprep.subr.mxu0 0.0
  %487 = vmatpush1.msra.mxu0 %v217
  %488 = vmatprep.subr.mxu0 0.0
  %489 = vmatpush1.msra.mxu0 0.0
  %490 = vmatprep.subr.mxu0 0.0
  %491 = vmatpush1.msra.mxu0 0.0
  %492 = vmatprep.subr.mxu0 0.0
  %493 = vmatpush1.msra.mxu0 0.0
  %494 = vmatprep.subr.mxu0 0.0
  %495 = vmatpush1.msra.mxu0 0.0
  %496 = vmatprep.subr.mxu0 0.0
  %497 = vmatpush1.msra.mxu0 0.0
  %498 = vmatprep.subr.mxu0 0.0
  %499 = vmatpush1.msra.mxu0 0.0
  %500 = vmatprep.subr.mxu0 0.0
  %501 = vmatpush1.msra.mxu0 0.0
  %502 = vmatprep.subr.mxu0 0.0
  %503 = vmatpush1.msra.mxu0 0.0
  %504 = vmatprep.subr.mxu0 0.0
  %505 = vmatpush1.msra.mxu0 0.0
  %506 = vmatprep.subr.mxu0 0.0
  %507 = vmatpush1.msra.mxu0 0.0
  %508 = vmatprep.subr.mxu0 0.0
  %509 = vmatpush1.msra.mxu0 0.0
  %510 = vmatprep.subr.mxu0 0.0
  %511 = vmatpush1.msra.mxu0 0.0
  %512 = vmatprep.subr.mxu0 0.0
  %513 = vmatpush1.msra.mxu0 0.0
  %514 = vmatprep.subr.mxu0 0.0
  %515 = vmatpush1.msra.mxu0 0.0
  %516 = vmatprep.subr.mxu0 0.0
  %517 = vmatpush1.msra.mxu0 0.0
  %518 = vmatprep.subr.mxu0 0.0
  %519 = vmatpush1.msra.mxu0 0.0
  %520 = vmatprep.subr.mxu0 0.0
  %521 = vmatpush1.msra.mxu0 0.0
  %522 = vmatprep.subr.mxu0 0.0
  %523 = vmatpush1.msra.mxu0 0.0
  %524 = vmatprep.subr.mxu0 0.0
  %525 = vmatpush1.msra.mxu0 0.0
  %526 = vmatprep.subr.mxu0 0.0
  %527 = vmatpush1.msra.mxu0 0.0
  %528 = vmatprep.subr.mxu0 0.0
  %529 = vmatpush1.msra.mxu0 0.0
  %530 = vmatprep.subr.mxu0 0.0
  %531 = vmatpush1.msra.mxu0 0.0
  %532 = vmatprep.subr.mxu0 0.0
  %533 = vmatpush1.msra.mxu0 0.0
  %534 = vmatprep.subr.mxu0 0.0
  %535 = vmatpush1.msra.mxu0 0.0
  %536 = vmatprep.subr.mxu0 0.0
  %537 = vmatpush1.msra.mxu0 0.0
  %538 = vmatprep.subr.mxu0 0.0
  %539 = vmatpush1.msra.mxu0 0.0
  %540 = vmatprep.subr.mxu0 0.0
  %541 = vmatpush1.msra.mxu0 0.0
  %542 = vmatprep.subr.mxu0 0.0
  %543 = vmatpush1.msra.mxu0 0.0
  %544 = vmatprep.subr.mxu0 0.0
  %545 = vmatpush1.msra.mxu0 0.0
  %546 = vmatprep.subr.mxu0 0.0
  %547 = vmatpush1.msra.mxu0 0.0
  %548 = vmatprep.mubr.f32.mxu0 0.0
  %549 = vmatmul.mubr.f32.gmra.mrb[0].mxu0 %v464
  %v550 = vpop.f32.mrb[0].mxu0
  %v551 = vadd.f32 0.0, %v550
  %v552 = vpop.f32.mrb[0].mxu0
  %553 = vmatprep.mubr.f32.mxu0 0.0
  %554 = vmatmul.mubr.f32.gmra.mrb[0].mxu0 %v467
  %v555 = vpop.f32.mrb[0].mxu0
  %v556 = vadd.f32 0.0, %v555
  %v557 = vpop.f32.mrb[0].mxu0
  %558 = vmatprep.mubr.f32.mxu0 0.0
  %559 = vmatmul.mubr.f32.gmra.mrb[0].mxu0 %v470
  %v560 = vpop.f32.mrb[0].mxu0
  %v561 = vadd.f32 0.0, %v560
  %v562 = vpop.f32.mrb[0].mxu0
  %563 = vmatprep.mubr.f32.mxu0 0.0
  %564 = vmatmul.mubr.f32.gmra.mrb[0].mxu0 %v473
  %v565 = vpop.f32.mrb[0].mxu0
  %v566 = vadd.f32 0.0, %v565
  %v567 = vpop.f32.mrb[0].mxu0
  %568 = vmatprep.mubr.f32.mxu0 0.0
  %569 = vmatmul.mubr.f32.gmra.mrb[0].mxu0 %v476
  %v570 = vpop.f32.mrb[0].mxu0
  %v571 = vadd.f32 0.0, %v570
  %v572 = vpop.f32.mrb[0].mxu0
  %573 = vmatprep.mubr.f32.mxu0 0.0
  %574 = vmatmul.mubr.f32.gmra.mrb[0].mxu0 %v479
  %v575 = vpop.f32.mrb[0].mxu0
  %v576 = vadd.f32 0.0, %v575
  %v577 = vpop.f32.mrb[0].mxu0
  %578 = vmatprep.mubr.f32.mxu0 0.0
  %579 = vmatmul.mubr.f32.gmra.mrb[0].mxu0 %v482
  %v580 = vpop.f32.mrb[0].mxu0
  %v581 = vadd.f32 0.0, %v580
  %v582 = vpop.f32.mrb[0].mxu0
  %583 = vdwg.mxu0
  %v584 = vmax.f32 %v448, %v551
  %v585 = vmax.f32 %v449, %v556
  %v586 = vmax.f32 %v450, %v561
  %v587 = vmax.f32 %v451, %v566
  %v588 = vmax.f32 %v452, %v571
  %v589 = vmax.f32 %v453, %v576
  %v590 = vmax.f32 %v454, %v581
  %s591 = scalar_lea.vmem %s0, 168
  %v592 = vld [vmem:[%s591] sm:$0xff]
  %v593 = vld [vmem:[%s591 + $0x8] sm:$0xff]
  %v594 = vld [vmem:[%s591 + $0x10] sm:$0xff]
  %v595 = vld [vmem:[%s591 + $0x18] sm:$0xff]
  %v596 = vld [vmem:[%s591 + $0x20] sm:$0xff]
  %v597 = vld [vmem:[%s591 + $0x28] sm:$0xff]
  %v598 = vld [vmem:[%s591 + $0x30] sm:$0x3]
  %v600 = vsel %vm193, %v592, 0
  %v603 = vsel %vm193, %v593, 0
  %v606 = vsel %vm193, %v594, 0
  %v609 = vsel %vm193, %v595, 0
  %v612 = vsel %vm193, %v596, 0
  %v615 = vsel %vm193, %v597, 0
  %v618 = vsel %vm193, %v598, 0
  %620 = vmatprep.subr.mxu0 0.0
  %621 = vmatpush1.msra.mxu0 %v103
  %622 = vmatprep.subr.mxu0 0.0
  %623 = vmatpush1.msra.mxu0 %v217
  %624 = vmatprep.subr.mxu0 0.0
  %625 = vmatpush1.msra.mxu0 0.0
  %626 = vmatprep.subr.mxu0 0.0
  %627 = vmatpush1.msra.mxu0 0.0
  %628 = vmatprep.subr.mxu0 0.0
  %629 = vmatpush1.msra.mxu0 0.0
  %630 = vmatprep.subr.mxu0 0.0
  %631 = vmatpush1.msra.mxu0 0.0
  %632 = vmatprep.subr.mxu0 0.0
  %633 = vmatpush1.msra.mxu0 0.0
  %634 = vmatprep.subr.mxu0 0.0
  %635 = vmatpush1.msra.mxu0 0.0
  %636 = vmatprep.subr.mxu0 0.0
  %637 = vmatpush1.msra.mxu0 0.0
  %638 = vmatprep.subr.mxu0 0.0
  %639 = vmatpush1.msra.mxu0 0.0
  %640 = vmatprep.subr.mxu0 0.0
  %641 = vmatpush1.msra.mxu0 0.0
  %642 = vmatprep.subr.mxu0 0.0
  %643 = vmatpush1.msra.mxu0 0.0
  %644 = vmatprep.subr.mxu0 0.0
  %645 = vmatpush1.msra.mxu0 0.0
  %646 = vmatprep.subr.mxu0 0.0
  %647 = vmatpush1.msra.mxu0 0.0
  %648 = vmatprep.subr.mxu0 0.0
  %649 = vmatpush1.msra.mxu0 0.0
  %650 = vmatprep.subr.mxu0 0.0
  %651 = vmatpush1.msra.mxu0 0.0
  %652 = vmatprep.subr.mxu0 0.0
  %653 = vmatpush1.msra.mxu0 0.0
  %654 = vmatprep.subr.mxu0 0.0
  %655 = vmatpush1.msra.mxu0 0.0
  %656 = vmatprep.subr.mxu0 0.0
  %657 = vmatpush1.msra.mxu0 0.0
  %658 = vmatprep.subr.mxu0 0.0
  %659 = vmatpush1.msra.mxu0 0.0
  %660 = vmatprep.subr.mxu0 0.0
  %661 = vmatpush1.msra.mxu0 0.0
  %662 = vmatprep.subr.mxu0 0.0
  %663 = vmatpush1.msra.mxu0 0.0
  %664 = vmatprep.subr.mxu0 0.0
  %665 = vmatpush1.msra.mxu0 0.0
  %666 = vmatprep.subr.mxu0 0.0
  %667 = vmatpush1.msra.mxu0 0.0
  %668 = vmatprep.subr.mxu0 0.0
  %669 = vmatpush1.msra.mxu0 0.0
  %670 = vmatprep.subr.mxu0 0.0
  %671 = vmatpush1.msra.mxu0 0.0
  %672 = vmatprep.subr.mxu0 0.0
  %673 = vmatpush1.msra.mxu0 0.0
  %674 = vmatprep.subr.mxu0 0.0
  %675 = vmatpush1.msra.mxu0 0.0
  %676 = vmatprep.subr.mxu0 0.0
  %677 = vmatpush1.msra.mxu0 0.0
  %678 = vmatprep.subr.mxu0 0.0
  %679 = vmatpush1.msra.mxu0 0.0
  %680 = vmatprep.subr.mxu0 0.0
  %681 = vmatpush1.msra.mxu0 0.0
  %682 = vmatprep.subr.mxu0 0.0
  %683 = vmatpush1.msra.mxu0 0.0
  %684 = vmatprep.mubr.f32.mxu0 0.0
  %685 = vmatmul.mubr.f32.gmra.mrb[0].mxu0 %v600
  %v686 = vpop.f32.mrb[0].mxu0
  %v687 = vadd.f32 0.0, %v686
  %v688 = vpop.f32.mrb[0].mxu0
  %689 = vmatprep.mubr.f32.mxu0 0.0
  %690 = vmatmul.mubr.f32.gmra.mrb[0].mxu0 %v603
  %v691 = vpop.f32.mrb[0].mxu0
  %v692 = vadd.f32 0.0, %v691
  %v693 = vpop.f32.mrb[0].mxu0
  %694 = vmatprep.mubr.f32.mxu0 0.0
  %695 = vmatmul.mubr.f32.gmra.mrb[0].mxu0 %v606
  %v696 = vpop.f32.mrb[0].mxu0
  %v697 = vadd.f32 0.0, %v696
  %v698 = vpop.f32.mrb[0].mxu0
  %699 = vmatprep.mubr.f32.mxu0 0.0
  %700 = vmatmul.mubr.f32.gmra.mrb[0].mxu0 %v609
  %v701 = vpop.f32.mrb[0].mxu0
  %v702 = vadd.f32 0.0, %v701
  %v703 = vpop.f32.mrb[0].mxu0
  %704 = vmatprep.mubr.f32.mxu0 0.0
  %705 = vmatmul.mubr.f32.gmra.mrb[0].mxu0 %v612
  %v706 = vpop.f32.mrb[0].mxu0
  %v707 = vadd.f32 0.0, %v706
  %v708 = vpop.f32.mrb[0].mxu0
  %709 = vmatprep.mubr.f32.mxu0 0.0
  %710 = vmatmul.mubr.f32.gmra.mrb[0].mxu0 %v615
  %v711 = vpop.f32.mrb[0].mxu0
  %v712 = vadd.f32 0.0, %v711
  %v713 = vpop.f32.mrb[0].mxu0
  %714 = vmatprep.mubr.f32.mxu0 0.0
  %715 = vmatmul.mubr.f32.gmra.mrb[0].mxu0 %v618
  %v716 = vpop.f32.mrb[0].mxu0
  %v717 = vadd.f32 0.0, %v716
  %v718 = vpop.f32.mrb[0].mxu0
  %719 = vdwg.mxu0
  %v720 = vmax.f32 %v584, %v687
  %v721 = vmax.f32 %v585, %v692
  %v722 = vmax.f32 %v586, %v697
  %v723 = vmax.f32 %v587, %v702
  %v724 = vmax.f32 %v588, %v707
  %v725 = vmax.f32 %v589, %v712
  %v726 = vmax.f32 %v590, %v717
  %v727 = vld [vmem:[%s1] sm:$0xff]
  %v728 = vld [vmem:[%s1 + $0x8] sm:$0xff]
  %v729 = vld [vmem:[%s1 + $0x10] sm:$0xff]
  %v730 = vld [vmem:[%s1 + $0x18] sm:$0xff]
  %v731 = vld [vmem:[%s1 + $0x20] sm:$0xff]
  %v732 = vld [vmem:[%s1 + $0x28] sm:$0xff]
  %v733 = vld [vmem:[%s1 + $0x30] sm:$0x3]
  %v735 = vsel %vm193, %v727, 0
  %v738 = vsel %vm193, %v728, 0
  %v741 = vsel %vm193, %v729, 0
  %v744 = vsel %vm193, %v730, 0
  %v747 = vsel %vm193, %v731, 0
  %v750 = vsel %vm193, %v732, 0
  %v753 = vsel %vm193, %v733, 0
  %755 = vmatprep.subr.mxu0 0.0
  %756 = vmatpush1.msra.mxu0 %v103
  %757 = vmatprep.subr.mxu0 0.0
  %758 = vmatpush1.msra.mxu0 %v217
  %759 = vmatprep.subr.mxu0 0.0
  %760 = vmatpush1.msra.mxu0 0.0
  %761 = vmatprep.subr.mxu0 0.0
  %762 = vmatpush1.msra.mxu0 0.0
  %763 = vmatprep.subr.mxu0 0.0
  %764 = vmatpush1.msra.mxu0 0.0
  %765 = vmatprep.subr.mxu0 0.0
  %766 = vmatpush1.msra.mxu0 0.0
  %767 = vmatprep.subr.mxu0 0.0
  %768 = vmatpush1.msra.mxu0 0.0
  %769 = vmatprep.subr.mxu0 0.0
  %770 = vmatpush1.msra.mxu0 0.0
  %771 = vmatprep.subr.mxu0 0.0
  %772 = vmatpush1.msra.mxu0 0.0
  %773 = vmatprep.subr.mxu0 0.0
  %774 = vmatpush1.msra.mxu0 0.0
  %775 = vmatprep.subr.mxu0 0.0
  %776 = vmatpush1.msra.mxu0 0.0
  %777 = vmatprep.subr.mxu0 0.0
  %778 = vmatpush1.msra.mxu0 0.0
  %779 = vmatprep.subr.mxu0 0.0
  %780 = vmatpush1.msra.mxu0 0.0
  %781 = vmatprep.subr.mxu0 0.0
  %782 = vmatpush1.msra.mxu0 0.0
  %783 = vmatprep.subr.mxu0 0.0
  %784 = vmatpush1.msra.mxu0 0.0
  %785 = vmatprep.subr.mxu0 0.0
  %786 = vmatpush1.msra.mxu0 0.0
  %787 = vmatprep.subr.mxu0 0.0
  %788 = vmatpush1.msra.mxu0 0.0
  %789 = vmatprep.subr.mxu0 0.0
  %790 = vmatpush1.msra.mxu0 0.0
  %791 = vmatprep.subr.mxu0 0.0
  %792 = vmatpush1.msra.mxu0 0.0
  %793 = vmatprep.subr.mxu0 0.0
  %794 = vmatpush1.msra.mxu0 0.0
  %795 = vmatprep.subr.mxu0 0.0
  %796 = vmatpush1.msra.mxu0 0.0
  %797 = vmatprep.subr.mxu0 0.0
  %798 = vmatpush1.msra.mxu0 0.0
  %799 = vmatprep.subr.mxu0 0.0
  %800 = vmatpush1.msra.mxu0 0.0
  %801 = vmatprep.subr.mxu0 0.0
  %802 = vmatpush1.msra.mxu0 0.0
  %803 = vmatprep.subr.mxu0 0.0
  %804 = vmatpush1.msra.mxu0 0.0
  %805 = vmatprep.subr.mxu0 0.0
  %806 = vmatpush1.msra.mxu0 0.0
  %807 = vmatprep.subr.mxu0 0.0
  %808 = vmatpush1.msra.mxu0 0.0
  %809 = vmatprep.subr.mxu0 0.0
  %810 = vmatpush1.msra.mxu0 0.0
  %811 = vmatprep.subr.mxu0 0.0
  %812 = vmatpush1.msra.mxu0 0.0
  %813 = vmatprep.subr.mxu0 0.0
  %814 = vmatpush1.msra.mxu0 0.0
  %815 = vmatprep.subr.mxu0 0.0
  %816 = vmatpush1.msra.mxu0 0.0
  %817 = vmatprep.subr.mxu0 0.0
  %818 = vmatpush1.msra.mxu0 0.0
  %819 = vmatprep.mubr.f32.mxu0 0.0
  %820 = vmatmul.mubr.f32.gmra.mrb[0].mxu0 %v735
  %v821 = vpop.f32.mrb[0].mxu0
  %v822 = vadd.f32 0.0, %v821
  %v823 = vpop.f32.mrb[0].mxu0
  %824 = vmatprep.mubr.f32.mxu0 0.0
  %825 = vmatmul.mubr.f32.gmra.mrb[0].mxu0 %v738
  %v826 = vpop.f32.mrb[0].mxu0
  %v827 = vadd.f32 0.0, %v826
  %v828 = vpop.f32.mrb[0].mxu0
  %829 = vmatprep.mubr.f32.mxu0 0.0
  %830 = vmatmul.mubr.f32.gmra.mrb[0].mxu0 %v741
  %v831 = vpop.f32.mrb[0].mxu0
  %v832 = vadd.f32 0.0, %v831
  %v833 = vpop.f32.mrb[0].mxu0
  %834 = vmatprep.mubr.f32.mxu0 0.0
  %835 = vmatmul.mubr.f32.gmra.mrb[0].mxu0 %v744
  %v836 = vpop.f32.mrb[0].mxu0
  %v837 = vadd.f32 0.0, %v836
  %v838 = vpop.f32.mrb[0].mxu0
  %839 = vmatprep.mubr.f32.mxu0 0.0
  %840 = vmatmul.mubr.f32.gmra.mrb[0].mxu0 %v747
  %v841 = vpop.f32.mrb[0].mxu0
  %v842 = vadd.f32 0.0, %v841
  %v843 = vpop.f32.mrb[0].mxu0
  %844 = vmatprep.mubr.f32.mxu0 0.0
  %845 = vmatmul.mubr.f32.gmra.mrb[0].mxu0 %v750
  %v846 = vpop.f32.mrb[0].mxu0
  %v847 = vadd.f32 0.0, %v846
  %v848 = vpop.f32.mrb[0].mxu0
  %849 = vmatprep.mubr.f32.mxu0 0.0
  %850 = vmatmul.mubr.f32.gmra.mrb[0].mxu0 %v753
  %v851 = vpop.f32.mrb[0].mxu0
  %v852 = vadd.f32 0.0, %v851
  %v853 = vpop.f32.mrb[0].mxu0
  %854 = vdwg.mxu0
  %s855 = scalar_lea.vmem %s1, 56
  %v856 = vld [vmem:[%s855] sm:$0xff]
  %v857 = vld [vmem:[%s855 + $0x8] sm:$0xff]
  %v858 = vld [vmem:[%s855 + $0x10] sm:$0xff]
  %v859 = vld [vmem:[%s855 + $0x18] sm:$0xff]
  %v860 = vld [vmem:[%s855 + $0x20] sm:$0xff]
  %v861 = vld [vmem:[%s855 + $0x28] sm:$0xff]
  %v862 = vld [vmem:[%s855 + $0x30] sm:$0x3]
  %v864 = vsel %vm193, %v856, 0
  %v867 = vsel %vm193, %v857, 0
  %v870 = vsel %vm193, %v858, 0
  %v873 = vsel %vm193, %v859, 0
  %v876 = vsel %vm193, %v860, 0
  %v879 = vsel %vm193, %v861, 0
  %v882 = vsel %vm193, %v862, 0
  %884 = vmatprep.subr.mxu0 0.0
  %885 = vmatpush1.msra.mxu0 %v103
  %886 = vmatprep.subr.mxu0 0.0
  %887 = vmatpush1.msra.mxu0 %v217
  %888 = vmatprep.subr.mxu0 0.0
  %889 = vmatpush1.msra.mxu0 0.0
  %890 = vmatprep.subr.mxu0 0.0
  %891 = vmatpush1.msra.mxu0 0.0
  %892 = vmatprep.subr.mxu0 0.0
  %893 = vmatpush1.msra.mxu0 0.0
  %894 = vmatprep.subr.mxu0 0.0
  %895 = vmatpush1.msra.mxu0 0.0
  %896 = vmatprep.subr.mxu0 0.0
  %897 = vmatpush1.msra.mxu0 0.0
  %898 = vmatprep.subr.mxu0 0.0
  %899 = vmatpush1.msra.mxu0 0.0
  %900 = vmatprep.subr.mxu0 0.0
  %901 = vmatpush1.msra.mxu0 0.0
  %902 = vmatprep.subr.mxu0 0.0
  %903 = vmatpush1.msra.mxu0 0.0
  %904 = vmatprep.subr.mxu0 0.0
  %905 = vmatpush1.msra.mxu0 0.0
  %906 = vmatprep.subr.mxu0 0.0
  %907 = vmatpush1.msra.mxu0 0.0
  %908 = vmatprep.subr.mxu0 0.0
  %909 = vmatpush1.msra.mxu0 0.0
  %910 = vmatprep.subr.mxu0 0.0
  %911 = vmatpush1.msra.mxu0 0.0
  %912 = vmatprep.subr.mxu0 0.0
  %913 = vmatpush1.msra.mxu0 0.0
  %914 = vmatprep.subr.mxu0 0.0
  %915 = vmatpush1.msra.mxu0 0.0
  %916 = vmatprep.subr.mxu0 0.0
  %917 = vmatpush1.msra.mxu0 0.0
  %918 = vmatprep.subr.mxu0 0.0
  %919 = vmatpush1.msra.mxu0 0.0
  %920 = vmatprep.subr.mxu0 0.0
  %921 = vmatpush1.msra.mxu0 0.0
  %922 = vmatprep.subr.mxu0 0.0
  %923 = vmatpush1.msra.mxu0 0.0
  %924 = vmatprep.subr.mxu0 0.0
  %925 = vmatpush1.msra.mxu0 0.0
  %926 = vmatprep.subr.mxu0 0.0
  %927 = vmatpush1.msra.mxu0 0.0
  %928 = vmatprep.subr.mxu0 0.0
  %929 = vmatpush1.msra.mxu0 0.0
  %930 = vmatprep.subr.mxu0 0.0
  %931 = vmatpush1.msra.mxu0 0.0
  %932 = vmatprep.subr.mxu0 0.0
  %933 = vmatpush1.msra.mxu0 0.0
  %934 = vmatprep.subr.mxu0 0.0
  %935 = vmatpush1.msra.mxu0 0.0
  %936 = vmatprep.subr.mxu0 0.0
  %937 = vmatpush1.msra.mxu0 0.0
  %938 = vmatprep.subr.mxu0 0.0
  %939 = vmatpush1.msra.mxu0 0.0
  %940 = vmatprep.subr.mxu0 0.0
  %941 = vmatpush1.msra.mxu0 0.0
  %942 = vmatprep.subr.mxu0 0.0
  %943 = vmatpush1.msra.mxu0 0.0
  %944 = vmatprep.subr.mxu0 0.0
  %945 = vmatpush1.msra.mxu0 0.0
  %946 = vmatprep.subr.mxu0 0.0
  %947 = vmatpush1.msra.mxu0 0.0
  %948 = vmatprep.mubr.f32.mxu0 0.0
  %949 = vmatmul.mubr.f32.gmra.mrb[0].mxu0 %v864
  %v950 = vpop.f32.mrb[0].mxu0
  %v951 = vadd.f32 0.0, %v950
  %v952 = vpop.f32.mrb[0].mxu0
  %953 = vmatprep.mubr.f32.mxu0 0.0
  %954 = vmatmul.mubr.f32.gmra.mrb[0].mxu0 %v867
  %v955 = vpop.f32.mrb[0].mxu0
  %v956 = vadd.f32 0.0, %v955
  %v957 = vpop.f32.mrb[0].mxu0
  %958 = vmatprep.mubr.f32.mxu0 0.0
  %959 = vmatmul.mubr.f32.gmra.mrb[0].mxu0 %v870
  %v960 = vpop.f32.mrb[0].mxu0
  %v961 = vadd.f32 0.0, %v960
  %v962 = vpop.f32.mrb[0].mxu0
  %963 = vmatprep.mubr.f32.mxu0 0.0
  %964 = vmatmul.mubr.f32.gmra.mrb[0].mxu0 %v873
  %v965 = vpop.f32.mrb[0].mxu0
  %v966 = vadd.f32 0.0, %v965
  %v967 = vpop.f32.mrb[0].mxu0
  %968 = vmatprep.mubr.f32.mxu0 0.0
  %969 = vmatmul.mubr.f32.gmra.mrb[0].mxu0 %v876
  %v970 = vpop.f32.mrb[0].mxu0
  %v971 = vadd.f32 0.0, %v970
  %v972 = vpop.f32.mrb[0].mxu0
  %973 = vmatprep.mubr.f32.mxu0 0.0
  %974 = vmatmul.mubr.f32.gmra.mrb[0].mxu0 %v879
  %v975 = vpop.f32.mrb[0].mxu0
  %v976 = vadd.f32 0.0, %v975
  %v977 = vpop.f32.mrb[0].mxu0
  %978 = vmatprep.mubr.f32.mxu0 0.0
  %979 = vmatmul.mubr.f32.gmra.mrb[0].mxu0 %v882
  %v980 = vpop.f32.mrb[0].mxu0
  %v981 = vadd.f32 0.0, %v980
  %v982 = vpop.f32.mrb[0].mxu0
  %983 = vdwg.mxu0
  %v984 = vmax.f32 %v822, %v951
  %v985 = vmax.f32 %v827, %v956
  %v986 = vmax.f32 %v832, %v961
  %v987 = vmax.f32 %v837, %v966
  %v988 = vmax.f32 %v842, %v971
  %v989 = vmax.f32 %v847, %v976
  %v990 = vmax.f32 %v852, %v981
  %s991 = scalar_lea.vmem %s1, 112
  %v992 = vld [vmem:[%s991] sm:$0xff]
  %v993 = vld [vmem:[%s991 + $0x8] sm:$0xff]
  %v994 = vld [vmem:[%s991 + $0x10] sm:$0xff]
  %v995 = vld [vmem:[%s991 + $0x18] sm:$0xff]
  %v996 = vld [vmem:[%s991 + $0x20] sm:$0xff]
  %v997 = vld [vmem:[%s991 + $0x28] sm:$0xff]
  %v998 = vld [vmem:[%s991 + $0x30] sm:$0x3]
  %v1000 = vsel %vm193, %v992, 0
  %v1003 = vsel %vm193, %v993, 0
  %v1006 = vsel %vm193, %v994, 0
  %v1009 = vsel %vm193, %v995, 0
  %v1012 = vsel %vm193, %v996, 0
  %v1015 = vsel %vm193, %v997, 0
  %v1018 = vsel %vm193, %v998, 0
  %1020 = vmatprep.subr.mxu0 0.0
  %1021 = vmatpush1.msra.mxu0 %v103
  %1022 = vmatprep.subr.mxu0 0.0
  %1023 = vmatpush1.msra.mxu0 %v217
  %1024 = vmatprep.subr.mxu0 0.0
  %1025 = vmatpush1.msra.mxu0 0.0
  %1026 = vmatprep.subr.mxu0 0.0
  %1027 = vmatpush1.msra.mxu0 0.0
  %1028 = vmatprep.subr.mxu0 0.0
  %1029 = vmatpush1.msra.mxu0 0.0
  %1030 = vmatprep.subr.mxu0 0.0
  %1031 = vmatpush1.msra.mxu0 0.0
  %1032 = vmatprep.subr.mxu0 0.0
  %1033 = vmatpush1.msra.mxu0 0.0
  %1034 = vmatprep.subr.mxu0 0.0
  %1035 = vmatpush1.msra.mxu0 0.0
  %1036 = vmatprep.subr.mxu0 0.0
  %1037 = vmatpush1.msra.mxu0 0.0
  %1038 = vmatprep.subr.mxu0 0.0
  %1039 = vmatpush1.msra.mxu0 0.0
  %1040 = vmatprep.subr.mxu0 0.0
  %1041 = vmatpush1.msra.mxu0 0.0
  %1042 = vmatprep.subr.mxu0 0.0
  %1043 = vmatpush1.msra.mxu0 0.0
  %1044 = vmatprep.subr.mxu0 0.0
  %1045 = vmatpush1.msra.mxu0 0.0
  %1046 = vmatprep.subr.mxu0 0.0
  %1047 = vmatpush1.msra.mxu0 0.0
  %1048 = vmatprep.subr.mxu0 0.0
  %1049 = vmatpush1.msra.mxu0 0.0
  %1050 = vmatprep.subr.mxu0 0.0
  %1051 = vmatpush1.msra.mxu0 0.0
  %1052 = vmatprep.subr.mxu0 0.0
  %1053 = vmatpush1.msra.mxu0 0.0
  %1054 = vmatprep.subr.mxu0 0.0
  %1055 = vmatpush1.msra.mxu0 0.0
  %1056 = vmatprep.subr.mxu0 0.0
  %1057 = vmatpush1.msra.mxu0 0.0
  %1058 = vmatprep.subr.mxu0 0.0
  %1059 = vmatpush1.msra.mxu0 0.0
  %1060 = vmatprep.subr.mxu0 0.0
  %1061 = vmatpush1.msra.mxu0 0.0
  %1062 = vmatprep.subr.mxu0 0.0
  %1063 = vmatpush1.msra.mxu0 0.0
  %1064 = vmatprep.subr.mxu0 0.0
  %1065 = vmatpush1.msra.mxu0 0.0
  %1066 = vmatprep.subr.mxu0 0.0
  %1067 = vmatpush1.msra.mxu0 0.0
  %1068 = vmatprep.subr.mxu0 0.0
  %1069 = vmatpush1.msra.mxu0 0.0
  %1070 = vmatprep.subr.mxu0 0.0
  %1071 = vmatpush1.msra.mxu0 0.0
  %1072 = vmatprep.subr.mxu0 0.0
  %1073 = vmatpush1.msra.mxu0 0.0
  %1074 = vmatprep.subr.mxu0 0.0
  %1075 = vmatpush1.msra.mxu0 0.0
  %1076 = vmatprep.subr.mxu0 0.0
  %1077 = vmatpush1.msra.mxu0 0.0
  %1078 = vmatprep.subr.mxu0 0.0
  %1079 = vmatpush1.msra.mxu0 0.0
  %1080 = vmatprep.subr.mxu0 0.0
  %1081 = vmatpush1.msra.mxu0 0.0
  %1082 = vmatprep.subr.mxu0 0.0
  %1083 = vmatpush1.msra.mxu0 0.0
  %1084 = vmatprep.mubr.f32.mxu0 0.0
  %1085 = vmatmul.mubr.f32.gmra.mrb[0].mxu0 %v1000
  %v1086 = vpop.f32.mrb[0].mxu0
  %v1087 = vadd.f32 0.0, %v1086
  %v1088 = vpop.f32.mrb[0].mxu0
  %1089 = vmatprep.mubr.f32.mxu0 0.0
  %1090 = vmatmul.mubr.f32.gmra.mrb[0].mxu0 %v1003
  %v1091 = vpop.f32.mrb[0].mxu0
  %v1092 = vadd.f32 0.0, %v1091
  %v1093 = vpop.f32.mrb[0].mxu0
  %1094 = vmatprep.mubr.f32.mxu0 0.0
  %1095 = vmatmul.mubr.f32.gmra.mrb[0].mxu0 %v1006
  %v1096 = vpop.f32.mrb[0].mxu0
  %v1097 = vadd.f32 0.0, %v1096
  %v1098 = vpop.f32.mrb[0].mxu0
  %1099 = vmatprep.mubr.f32.mxu0 0.0
  %1100 = vmatmul.mubr.f32.gmra.mrb[0].mxu0 %v1009
  %v1101 = vpop.f32.mrb[0].mxu0
  %v1102 = vadd.f32 0.0, %v1101
  %v1103 = vpop.f32.mrb[0].mxu0
  %1104 = vmatprep.mubr.f32.mxu0 0.0
  %1105 = vmatmul.mubr.f32.gmra.mrb[0].mxu0 %v1012
  %v1106 = vpop.f32.mrb[0].mxu0
  %v1107 = vadd.f32 0.0, %v1106
  %v1108 = vpop.f32.mrb[0].mxu0
  %1109 = vmatprep.mubr.f32.mxu0 0.0
  %1110 = vmatmul.mubr.f32.gmra.mrb[0].mxu0 %v1015
  %v1111 = vpop.f32.mrb[0].mxu0
  %v1112 = vadd.f32 0.0, %v1111
  %v1113 = vpop.f32.mrb[0].mxu0
  %1114 = vmatprep.mubr.f32.mxu0 0.0
  %1115 = vmatmul.mubr.f32.gmra.mrb[0].mxu0 %v1018
  %v1116 = vpop.f32.mrb[0].mxu0
  %v1117 = vadd.f32 0.0, %v1116
  %v1118 = vpop.f32.mrb[0].mxu0
  %1119 = vdwg.mxu0
  %v1120 = vmax.f32 %v984, %v1087
  %v1121 = vmax.f32 %v985, %v1092
  %v1122 = vmax.f32 %v986, %v1097
  %v1123 = vmax.f32 %v987, %v1102
  %v1124 = vmax.f32 %v988, %v1107
  %v1125 = vmax.f32 %v989, %v1112
  %v1126 = vmax.f32 %v990, %v1117
  %s1127 = scalar_lea.vmem %s1, 168
  %v1128 = vld [vmem:[%s1127] sm:$0xff]
  %v1129 = vld [vmem:[%s1127 + $0x8] sm:$0xff]
  %v1130 = vld [vmem:[%s1127 + $0x10] sm:$0xff]
  %v1131 = vld [vmem:[%s1127 + $0x18] sm:$0xff]
  %v1132 = vld [vmem:[%s1127 + $0x20] sm:$0xff]
  %v1133 = vld [vmem:[%s1127 + $0x28] sm:$0xff]
  %v1134 = vld [vmem:[%s1127 + $0x30] sm:$0x3]
  %v1136 = vsel %vm193, %v1128, 0
  %v1139 = vsel %vm193, %v1129, 0
  %v1142 = vsel %vm193, %v1130, 0
  %v1145 = vsel %vm193, %v1131, 0
  %v1148 = vsel %vm193, %v1132, 0
  %v1151 = vsel %vm193, %v1133, 0
  %v1154 = vsel %vm193, %v1134, 0
  %1156 = vmatprep.subr.mxu0 0.0
  %1157 = vmatpush1.msra.mxu0 %v103
  %1158 = vmatprep.subr.mxu0 0.0
  %1159 = vmatpush1.msra.mxu0 %v217
  %1160 = vmatprep.subr.mxu0 0.0
  %1161 = vmatpush1.msra.mxu0 0.0
  %1162 = vmatprep.subr.mxu0 0.0
  %1163 = vmatpush1.msra.mxu0 0.0
  %1164 = vmatprep.subr.mxu0 0.0
  %1165 = vmatpush1.msra.mxu0 0.0
  %1166 = vmatprep.subr.mxu0 0.0
  %1167 = vmatpush1.msra.mxu0 0.0
  %1168 = vmatprep.subr.mxu0 0.0
  %1169 = vmatpush1.msra.mxu0 0.0
  %1170 = vmatprep.subr.mxu0 0.0
  %1171 = vmatpush1.msra.mxu0 0.0
  %1172 = vmatprep.subr.mxu0 0.0
  %1173 = vmatpush1.msra.mxu0 0.0
  %1174 = vmatprep.subr.mxu0 0.0
  %1175 = vmatpush1.msra.mxu0 0.0
  %1176 = vmatprep.subr.mxu0 0.0
  %1177 = vmatpush1.msra.mxu0 0.0
  %1178 = vmatprep.subr.mxu0 0.0
  %1179 = vmatpush1.msra.mxu0 0.0
  %1180 = vmatprep.subr.mxu0 0.0
  %1181 = vmatpush1.msra.mxu0 0.0
  %1182 = vmatprep.subr.mxu0 0.0
  %1183 = vmatpush1.msra.mxu0 0.0
  %1184 = vmatprep.subr.mxu0 0.0
  %1185 = vmatpush1.msra.mxu0 0.0
  %1186 = vmatprep.subr.mxu0 0.0
  %1187 = vmatpush1.msra.mxu0 0.0
  %1188 = vmatprep.subr.mxu0 0.0
  %1189 = vmatpush1.msra.mxu0 0.0
  %1190 = vmatprep.subr.mxu0 0.0
  %1191 = vmatpush1.msra.mxu0 0.0
  %1192 = vmatprep.subr.mxu0 0.0
  %1193 = vmatpush1.msra.mxu0 0.0
  %1194 = vmatprep.subr.mxu0 0.0
  %1195 = vmatpush1.msra.mxu0 0.0
  %1196 = vmatprep.subr.mxu0 0.0
  %1197 = vmatpush1.msra.mxu0 0.0
  %1198 = vmatprep.subr.mxu0 0.0
  %1199 = vmatpush1.msra.mxu0 0.0
  %1200 = vmatprep.subr.mxu0 0.0
  %1201 = vmatpush1.msra.mxu0 0.0
  %1202 = vmatprep.subr.mxu0 0.0
  %1203 = vmatpush1.msra.mxu0 0.0
  %1204 = vmatprep.subr.mxu0 0.0
  %1205 = vmatpush1.msra.mxu0 0.0
  %1206 = vmatprep.subr.mxu0 0.0
  %1207 = vmatpush1.msra.mxu0 0.0
  %1208 = vmatprep.subr.mxu0 0.0
  %1209 = vmatpush1.msra.mxu0 0.0
  %1210 = vmatprep.subr.mxu0 0.0
  %1211 = vmatpush1.msra.mxu0 0.0
  %1212 = vmatprep.subr.mxu0 0.0
  %1213 = vmatpush1.msra.mxu0 0.0
  %1214 = vmatprep.subr.mxu0 0.0
  %1215 = vmatpush1.msra.mxu0 0.0
  %1216 = vmatprep.subr.mxu0 0.0
  %1217 = vmatpush1.msra.mxu0 0.0
  %1218 = vmatprep.subr.mxu0 0.0
  %1219 = vmatpush1.msra.mxu0 0.0
  %1220 = vmatprep.mubr.f32.mxu0 0.0
  %1221 = vmatmul.mubr.f32.gmra.mrb[0].mxu0 %v1136
  %v1222 = vpop.f32.mrb[0].mxu0
  %v1223 = vadd.f32 0.0, %v1222
  %v1224 = vpop.f32.mrb[0].mxu0
  %1225 = vmatprep.mubr.f32.mxu0 0.0
  %1226 = vmatmul.mubr.f32.gmra.mrb[0].mxu0 %v1139
  %v1227 = vpop.f32.mrb[0].mxu0
  %v1228 = vadd.f32 0.0, %v1227
  %v1229 = vpop.f32.mrb[0].mxu0
  %1230 = vmatprep.mubr.f32.mxu0 0.0
  %1231 = vmatmul.mubr.f32.gmra.mrb[0].mxu0 %v1142
  %v1232 = vpop.f32.mrb[0].mxu0
  %v1233 = vadd.f32 0.0, %v1232
  %v1234 = vpop.f32.mrb[0].mxu0
  %1235 = vmatprep.mubr.f32.mxu0 0.0
  %1236 = vmatmul.mubr.f32.gmra.mrb[0].mxu0 %v1145
  %v1237 = vpop.f32.mrb[0].mxu0
  %v1238 = vadd.f32 0.0, %v1237
  %v1239 = vpop.f32.mrb[0].mxu0
  %1240 = vmatprep.mubr.f32.mxu0 0.0
  %1241 = vmatmul.mubr.f32.gmra.mrb[0].mxu0 %v1148
  %v1242 = vpop.f32.mrb[0].mxu0
  %v1243 = vadd.f32 0.0, %v1242
  %v1244 = vpop.f32.mrb[0].mxu0
  %1245 = vmatprep.mubr.f32.mxu0 0.0
  %1246 = vmatmul.mubr.f32.gmra.mrb[0].mxu0 %v1151
  %v1247 = vpop.f32.mrb[0].mxu0
  %v1248 = vadd.f32 0.0, %v1247
  %v1249 = vpop.f32.mrb[0].mxu0
  %1250 = vmatprep.mubr.f32.mxu0 0.0
  %1251 = vmatmul.mubr.f32.gmra.mrb[0].mxu0 %v1154
  %v1252 = vpop.f32.mrb[0].mxu0
  %v1253 = vadd.f32 0.0, %v1252
  %v1254 = vpop.f32.mrb[0].mxu0
  %1255 = vdwg.mxu0
  %v1256 = vmax.f32 %v1120, %v1223
  %v1257 = vmax.f32 %v1121, %v1228
  %v1258 = vmax.f32 %v1122, %v1233
  %v1259 = vmax.f32 %v1123, %v1238
  %v1260 = vmax.f32 %v1124, %v1243
  %v1261 = vmax.f32 %v1125, %v1248
  %v1262 = vmax.f32 %v1126, %v1253
  %s1263 = scalar_lea.vmem %s1, 224
  %v1264 = vld [vmem:[%s1263] sm:$0xff]
  %v1265 = vld [vmem:[%s1263 + $0x8] sm:$0xff]
  %v1266 = vld [vmem:[%s1263 + $0x10] sm:$0xff]
  %v1267 = vld [vmem:[%s1263 + $0x18] sm:$0xff]
  %v1268 = vld [vmem:[%s1263 + $0x20] sm:$0xff]
  %v1269 = vld [vmem:[%s1263 + $0x28] sm:$0xff]
  %v1270 = vld [vmem:[%s1263 + $0x30] sm:$0x3]
  %v1272 = vsel %vm193, %v1264, 0
  %v1275 = vsel %vm193, %v1265, 0
  %v1278 = vsel %vm193, %v1266, 0
  %v1281 = vsel %vm193, %v1267, 0
  %v1284 = vsel %vm193, %v1268, 0
  %v1287 = vsel %vm193, %v1269, 0
  %v1290 = vsel %vm193, %v1270, 0
  %1292 = vmatprep.subr.mxu0 0.0
  %1293 = vmatpush1.msra.mxu0 %v103
  %1294 = vmatprep.subr.mxu0 0.0
  %1295 = vmatpush1.msra.mxu0 %v217
  %1296 = vmatprep.subr.mxu0 0.0
  %1297 = vmatpush1.msra.mxu0 0.0
  %1298 = vmatprep.subr.mxu0 0.0
  %1299 = vmatpush1.msra.mxu0 0.0
  %1300 = vmatprep.subr.mxu0 0.0
  %1301 = vmatpush1.msra.mxu0 0.0
  %1302 = vmatprep.subr.mxu0 0.0
  %1303 = vmatpush1.msra.mxu0 0.0
  %1304 = vmatprep.subr.mxu0 0.0
  %1305 = vmatpush1.msra.mxu0 0.0
  %1306 = vmatprep.subr.mxu0 0.0
  %1307 = vmatpush1.msra.mxu0 0.0
  %1308 = vmatprep.subr.mxu0 0.0
  %1309 = vmatpush1.msra.mxu0 0.0
  %1310 = vmatprep.subr.mxu0 0.0
  %1311 = vmatpush1.msra.mxu0 0.0
  %1312 = vmatprep.subr.mxu0 0.0
  %1313 = vmatpush1.msra.mxu0 0.0
  %1314 = vmatprep.subr.mxu0 0.0
  %1315 = vmatpush1.msra.mxu0 0.0
  %1316 = vmatprep.subr.mxu0 0.0
  %1317 = vmatpush1.msra.mxu0 0.0
  %1318 = vmatprep.subr.mxu0 0.0
  %1319 = vmatpush1.msra.mxu0 0.0
  %1320 = vmatprep.subr.mxu0 0.0
  %1321 = vmatpush1.msra.mxu0 0.0
  %1322 = vmatprep.subr.mxu0 0.0
  %1323 = vmatpush1.msra.mxu0 0.0
  %1324 = vmatprep.subr.mxu0 0.0
  %1325 = vmatpush1.msra.mxu0 0.0
  %1326 = vmatprep.subr.mxu0 0.0
  %1327 = vmatpush1.msra.mxu0 0.0
  %1328 = vmatprep.subr.mxu0 0.0
  %1329 = vmatpush1.msra.mxu0 0.0
  %1330 = vmatprep.subr.mxu0 0.0
  %1331 = vmatpush1.msra.mxu0 0.0
  %1332 = vmatprep.subr.mxu0 0.0
  %1333 = vmatpush1.msra.mxu0 0.0
  %1334 = vmatprep.subr.mxu0 0.0
  %1335 = vmatpush1.msra.mxu0 0.0
  %1336 = vmatprep.subr.mxu0 0.0
  %1337 = vmatpush1.msra.mxu0 0.0
  %1338 = vmatprep.subr.mxu0 0.0
  %1339 = vmatpush1.msra.mxu0 0.0
  %1340 = vmatprep.subr.mxu0 0.0
  %1341 = vmatpush1.msra.mxu0 0.0
  %1342 = vmatprep.subr.mxu0 0.0
  %1343 = vmatpush1.msra.mxu0 0.0
  %1344 = vmatprep.subr.mxu0 0.0
  %1345 = vmatpush1.msra.mxu0 0.0
  %1346 = vmatprep.subr.mxu0 0.0
  %1347 = vmatpush1.msra.mxu0 0.0
  %1348 = vmatprep.subr.mxu0 0.0
  %1349 = vmatpush1.msra.mxu0 0.0
  %1350 = vmatprep.subr.mxu0 0.0
  %1351 = vmatpush1.msra.mxu0 0.0
  %1352 = vmatprep.subr.mxu0 0.0
  %1353 = vmatpush1.msra.mxu0 0.0
  %1354 = vmatprep.subr.mxu0 0.0
  %1355 = vmatpush1.msra.mxu0 0.0
  %1356 = vmatprep.mubr.f32.mxu0 0.0
  %1357 = vmatmul.mubr.f32.gmra.mrb[0].mxu0 %v1272
  %v1358 = vpop.f32.mrb[0].mxu0
  %v1359 = vadd.f32 0.0, %v1358
  %v1360 = vpop.f32.mrb[0].mxu0
  %1361 = vmatprep.mubr.f32.mxu0 0.0
  %1362 = vmatmul.mubr.f32.gmra.mrb[0].mxu0 %v1275
  %v1363 = vpop.f32.mrb[0].mxu0
  %v1364 = vadd.f32 0.0, %v1363
  %v1365 = vpop.f32.mrb[0].mxu0
  %1366 = vmatprep.mubr.f32.mxu0 0.0
  %1367 = vmatmul.mubr.f32.gmra.mrb[0].mxu0 %v1278
  %v1368 = vpop.f32.mrb[0].mxu0
  %v1369 = vadd.f32 0.0, %v1368
  %v1370 = vpop.f32.mrb[0].mxu0
  %1371 = vmatprep.mubr.f32.mxu0 0.0
  %1372 = vmatmul.mubr.f32.gmra.mrb[0].mxu0 %v1281
  %v1373 = vpop.f32.mrb[0].mxu0
  %v1374 = vadd.f32 0.0, %v1373
  %v1375 = vpop.f32.mrb[0].mxu0
  %1376 = vmatprep.mubr.f32.mxu0 0.0
  %1377 = vmatmul.mubr.f32.gmra.mrb[0].mxu0 %v1284
  %v1378 = vpop.f32.mrb[0].mxu0
  %v1379 = vadd.f32 0.0, %v1378
  %v1380 = vpop.f32.mrb[0].mxu0
  %1381 = vmatprep.mubr.f32.mxu0 0.0
  %1382 = vmatmul.mubr.f32.gmra.mrb[0].mxu0 %v1287
  %v1383 = vpop.f32.mrb[0].mxu0
  %v1384 = vadd.f32 0.0, %v1383
  %v1385 = vpop.f32.mrb[0].mxu0
  %1386 = vmatprep.mubr.f32.mxu0 0.0
  %1387 = vmatmul.mubr.f32.gmra.mrb[0].mxu0 %v1290
  %v1388 = vpop.f32.mrb[0].mxu0
  %v1389 = vadd.f32 0.0, %v1388
  %v1390 = vpop.f32.mrb[0].mxu0
  %1391 = vdwg.mxu0
  %v1392 = vmax.f32 %v1256, %v1359
  %v1393 = vmax.f32 %v1257, %v1364
  %v1394 = vmax.f32 %v1258, %v1369
  %v1395 = vmax.f32 %v1259, %v1374
  %v1396 = vmax.f32 %v1260, %v1379
  %v1397 = vmax.f32 %v1261, %v1384
  %v1398 = vmax.f32 %v1262, %v1389
  %v1399 = vadd.f32 %v720, %v1392
  %v1400 = vadd.f32 %v721, %v1393
  %v1401 = vadd.f32 %v722, %v1394
  %v1402 = vadd.f32 %v723, %v1395
  %v1403 = vadd.f32 %v724, %v1396
  %v1404 = vadd.f32 %v725, %v1397
  %v1405 = vadd.f32 %v726, %v1398
  %v1406 = vmul.f32 %v183, 2.0
  %v1407 = vlaneseq
  %v1408 = vshrl.u32 %v1407, 7
  %v1409 = vsub.s32 0, %v1408
  %v1410 = vrot.slane %v1406, %v1409
  %v1411 = vadd.f32 %v1399, %v1410
  %v1412 = vadd.f32 %v1400, %v1410
  %v1413 = vadd.f32 %v1401, %v1410
  %v1414 = vadd.f32 %v1402, %v1410
  %v1415 = vadd.f32 %v1403, %v1410
  %v1416 = vadd.f32 %v1404, %v1410
  %v1417 = vadd.f32 %v1405, %v1410
  %vm1418 = vcmask 130048
  %1419 = vst.msk [vmem:[%s6] sm:$0xff] %vm1418, %v1411
  %1420 = vst.msk [vmem:[%s6 + $0x8] sm:$0xff] %vm1418, %v1412
  %1421 = vst.msk [vmem:[%s6 + $0x10] sm:$0xff] %vm1418, %v1413
  %1422 = vst.msk [vmem:[%s6 + $0x18] sm:$0xff] %vm1418, %v1414
  %1423 = vst.msk [vmem:[%s6 + $0x20] sm:$0xff] %vm1418, %v1415
  %1424 = vst.msk [vmem:[%s6 + $0x28] sm:$0xff] %vm1418, %v1416
  %vm1425 = vcmask 123904
  %1426 = vst.msk [vmem:[%s6 + $0x30] sm:$0x3] %vm1425, %v1417
  // Predicated region
  $region26: #{simple_forward.1} parent=0 // pred_check
    _
  $region27: #{simple_forward.1} parent=0 // pred_check_branch
    %1428 = sbr.rel (0) target = $region29
  $region28: #{simple_forward.1} parent=0 // pred_region
    _
  $region29: #{simple_forward.1} parent=0 // pred_fallthru
    _
  // Predicated region
  $region30: #{simple_forward.1} parent=0 // pred_check
    _
  $region31: #{simple_forward.1} parent=0 // pred_check_branch
    %1430 = sbr.rel (0) target = $region33
  $region32: #{simple_forward.1} parent=0 // pred_region
    _
  $region33: #{simple_forward.1} parent=0 // pred_fallthru
    _

</llo_original>
